<compile_context>
chip_gen: v7x
topology: tpu7x:2x2x1
jax: 0.10.0
libtpu: 0.0.40
codegen_flags: <defaults>
</compile_context>

<pallas_src>
import jax
import jax.numpy as jnp
from jax import lax
from jax.experimental import pallas as pl
from jax.experimental.pallas import tpu as pltpu

# ---- model hyper-parameters (small, shape-consistent instantiation) ----
VOCAB = 128      # vocab_size
H = 32           # embedding dim
L = 8            # sequence length == Conv1d in_channels
B = 16           # batch (demo); must be divisible by TB
TB = 8           # batch tile (sublane-aligned); raise to 128 for a lane-dense output path
CONV_SIZE = 1    # must be 1 for the PyTorch forward to be shape-valid
OUT_CH = 1       # must be 1 for Linear(out_channels, 2) to accept the pooled tensor
W_CONV = H - CONV_SIZE + 1   # conv output width (== H here)


def _tree_sum(terms):
    """Pairwise (tree) sum of a static list of arrays — avoids a serial add chain."""
    while len(terms) > 1:
        nxt = [terms[i] + terms[i + 1] for i in range(0, len(terms) - 1, 2)]
        if len(terms) % 2:
            nxt.append(terms[-1])
        terms = nxt
    return terms[0]


def cnn_tile_kernel(ids_ref, emb_ref, conv_w_ref, conv_b_ref, lin_w_ref, lin_b_ref, out_ref):
    # ids_ref:    (TB, L) int32  VMEM   (one batch tile of token ids)
    # emb_ref:    (VOCAB, H) f32 VMEM   (full table, resident across grid steps)
    # conv_w_ref: (L,) f32 SMEM         conv_b_ref: (1,) f32 SMEM
    # lin_w_ref:  (2,) f32 SMEM         lin_b_ref:  (2,) f32 SMEM
    # out_ref:    (TB, 2) f32 VMEM      (pre-softmax logits for this batch tile)

    # --- fused embedding + conv (CONV_SIZE==1, OUT_CH==1): weighted one-hot, vectorized
    # over the batch tile.  wonehot[b, v] = sum_l conv_w[l] * [ids[b, l] == v].
    ids = ids_ref[...]                                              # (TB, L) int32
    iota_v = lax.broadcasted_iota(jnp.int32, (TB, VOCAB), 1)        # lane index = token id
    terms = [
        jnp.where(iota_v == ids[:, l:l + 1], conv_w_ref[l], 0.0)    # static lane slice, bcast
        for l in range(L)
    ]
    wonehot = _tree_sum(terms)                                      # (TB, VOCAB) f32

    # Single MXU push per tile: (TB, VOCAB) @ (VOCAB, H) == conv1d output rows (no bias).
    conv = jnp.dot(wonehot, emb_ref[...], preferred_element_type=jnp.float32)   # (TB, H)

    # AvgPool2d((OUT_CH, H)) + bias + .clamp(min=0): with W_CONV == H the bias is
    # constant over the pooling window, so mean(conv) + bias is exact.
    pooled = jnp.maximum(jnp.mean(conv, axis=-1, keepdims=True) + conv_b_ref[0], 0.0)  # (TB,1)

    # Linear(OUT_CH=1, 2): broadcast scalar weights / bias from SMEM.
    col = lax.broadcasted_iota(jnp.int32, (TB, 2), 1)
    w_row = jnp.where(col == 0, lin_w_ref[0], lin_w_ref[1])
    b_row = jnp.where(col == 0, lin_b_ref[0], lin_b_ref[1])
    out_ref[...] = pooled * w_row + b_row                           # (TB, 2) logits


def cnn_forward(x, emb, conv_w, conv_b, lin_w, lin_b):
    assert CONV_SIZE == 1 and OUT_CH == 1, (
        "PyTorch CNN.forward is only shape-consistent for conv_size==1, out_channels==1")
    bsz, seq = x.shape
    assert seq == L and bsz % TB == 0

    logits = pl.pallas_call(
        cnn_tile_kernel,
        out_shape=jax.ShapeDtypeStruct((bsz, 2), jnp.float32),
        grid=(bsz // TB,),
        in_specs=[
            pl.BlockSpec((TB, L), lambda i: (i, 0)),                 # ids: one batch tile/step
            pl.BlockSpec((VOCAB, H), lambda i: (0, 0)),              # emb table: resident block
            pl.BlockSpec(memory_space=pltpu.MemorySpace.SMEM),       # conv weight (scalars)
            pl.BlockSpec(memory_space=pltpu.MemorySpace.SMEM),       # conv bias
            pl.BlockSpec(memory_space=pltpu.MemorySpace.SMEM),       # linear weight
            pl.BlockSpec(memory_space=pltpu.MemorySpace.SMEM),       # linear bias
        ],
        out_specs=pl.BlockSpec((TB, 2), lambda i: (i, 0)),
        compiler_params=pltpu.CompilerParams(
            dimension_semantics=("parallel",)),                      # v7x: shard batch over 2 TCs
    )(x.astype(jnp.int32), emb, conv_w.reshape(L), conv_b, lin_w.reshape(2), lin_b)

    # F.softmax on a 3-D (B, 1, 2) tensor defaults to dim=0 (the batch axis).  This is a
    # full-batch reduction, so it runs in the wrapper (3 tiny ops) rather than inside the
    # batch-parallel grid.
    probs = jax.nn.softmax(logits, axis=0)
    return probs.reshape(bsz, 1, 2)                                  # matches PyTorch (B, 1, 2)


def cnn_reference(x, emb, conv_w, conv_b, lin_w, lin_b):
    """Pure-JAX replica of the exact PyTorch forward (for verification)."""
    h_emb = emb[x]                                                   # (B, L, H)
    conv = jnp.zeros((x.shape[0], OUT_CH, W_CONV), jnp.float32)
    for k in range(CONV_SIZE):
        conv = conv + jnp.einsum('bch,oc->boh', h_emb[:, :, k:k + W_CONV], conv_w[:, :, k])
    conv = conv + conv_b[None, :, None]
    h_pool = jnp.mean(conv[:, :OUT_CH, :H], axis=(1, 2), keepdims=True)  # AvgPool2d((O,H))
    h_pool = jnp.maximum(h_pool, 0.0)                                # .clamp(min=0), (B,1,1)
    h_lin = h_pool @ lin_w.T + lin_b                                 # (B, 1, 2)
    return jax.nn.softmax(h_lin, axis=0)                             # F.softmax -> dim=0 for 3-D


if __name__ == "__main__":
    key = jax.random.PRNGKey(0)
    k_ids, k_emb, k_cw, k_cb, k_lw, k_lb = jax.random.split(key, 6)

    x = jax.random.randint(k_ids, (B, L), 0, VOCAB, dtype=jnp.int32)
    emb = jax.random.normal(k_emb, (VOCAB, H), jnp.float32)          # nn.Embedding weight
    cbound = 1.0 / (L * CONV_SIZE) ** 0.5
    conv_w = jax.random.uniform(k_cw, (OUT_CH, L, CONV_SIZE), jnp.float32, -cbound, cbound)
    conv_b = jax.random.uniform(k_cb, (OUT_CH,), jnp.float32, -cbound, cbound)
    lbound = 1.0 / OUT_CH ** 0.5
    lin_w = jax.random.uniform(k_lw, (2, OUT_CH), jnp.float32, -lbound, lbound)
    lin_b = jax.random.uniform(k_lb, (2,), jnp.float32, -lbound, lbound)

    out = cnn_forward(x, emb, conv_w, conv_b, lin_w, lin_b)
    out = jax.block_until_ready(out)

    ref = cnn_reference(x, emb, conv_w, conv_b, lin_w, lin_b)
    assert out.shape == (B, 1, 2)
    assert jnp.allclose(out, ref, atol=1e-5, rtol=1e-5), (out, ref)
    print("KERNEL_OK")
</pallas_src>

<mosaic_0001>
module attributes {stable_mosaic.version = 11 : i64} {
  func.func @cnn_tile_kernel(%arg0: i32, %arg1: memref<8x8xi32, #tpu.memory_space<vmem>>, %arg2: memref<128x32xf32, #tpu.memory_space<vmem>>, %arg3: memref<8xf32, #tpu.memory_space<smem>>, %arg4: memref<1xf32, #tpu.memory_space<smem>>, %arg5: memref<2xf32, #tpu.memory_space<smem>>, %arg6: memref<2xf32, #tpu.memory_space<smem>>, %arg7: memref<8x2xf32, #tpu.memory_space<vmem>>) attributes {dimension_semantics = [#tpu.dimension_semantics<parallel>], iteration_bounds = array<i64: 2>, scalar_prefetch = 0 : i64, scratch_operands = 0 : i64, tpu.core_type = #tpu.core_type<tc>, window_params = [{transform_indices = @transform_0, window_bounds = array<i64: 8, 8>}, {pipeline_mode = #tpu.pipeline_mode<synchronous>, transform_indices = @transform_1, window_bounds = array<i64: 128, 32>}, {transform_indices = @transform_2, window_bounds = array<i64: 8>}, {transform_indices = @transform_3, window_bounds = array<i64: 1>}, {transform_indices = @transform_4, window_bounds = array<i64: 2>}, {transform_indices = @transform_5, window_bounds = array<i64: 2>}, {transform_indices = @transform_6, window_bounds = array<i64: 8, 2>}]} {
    %c0 = arith.constant 0 : index
    %c0_0 = arith.constant 0 : index
    %0 = vector.load %arg1[%c0, %c0_0] : memref<8x8xi32, #tpu.memory_space<vmem>>, vector<8x8xi32>
    %1 = tpu.iota {dimensions = array<i32: 1>} : vector<8x128xi32>
    %2 = vector.extract_strided_slice %0 {offsets = [0, 0], sizes = [8, 1], strides = [1, 1]} : vector<8x8xi32> to vector<8x1xi32>
    %3 = vector.broadcast %2 : vector<8x1xi32> to vector<8x128xi32>
    %4 = arith.cmpi eq, %1, %3 : vector<8x128xi32>
    %c0_1 = arith.constant 0 : index
    %5 = memref.load %arg3[%c0_1] : memref<8xf32, #tpu.memory_space<smem>>
    %cst = arith.constant 0.000000e+00 : f32
    %6 = vector.broadcast %5 : f32 to vector<8x128xf32>
    %7 = vector.broadcast %cst : f32 to vector<8x128xf32>
    %8 = arith.select %4, %6, %7 : vector<8x128xi1>, vector<8x128xf32>
    %9 = vector.extract_strided_slice %0 {offsets = [0, 1], sizes = [8, 1], strides = [1, 1]} : vector<8x8xi32> to vector<8x1xi32>
    %10 = vector.broadcast %9 : vector<8x1xi32> to vector<8x128xi32>
    %11 = arith.cmpi eq, %1, %10 : vector<8x128xi32>
    %c1 = arith.constant 1 : index
    %12 = memref.load %arg3[%c1] : memref<8xf32, #tpu.memory_space<smem>>
    %cst_2 = arith.constant 0.000000e+00 : f32
    %13 = vector.broadcast %12 : f32 to vector<8x128xf32>
    %14 = vector.broadcast %cst_2 : f32 to vector<8x128xf32>
    %15 = arith.select %11, %13, %14 : vector<8x128xi1>, vector<8x128xf32>
    %16 = vector.extract_strided_slice %0 {offsets = [0, 2], sizes = [8, 1], strides = [1, 1]} : vector<8x8xi32> to vector<8x1xi32>
    %17 = vector.broadcast %16 : vector<8x1xi32> to vector<8x128xi32>
    %18 = arith.cmpi eq, %1, %17 : vector<8x128xi32>
    %c2 = arith.constant 2 : index
    %19 = memref.load %arg3[%c2] : memref<8xf32, #tpu.memory_space<smem>>
    %cst_3 = arith.constant 0.000000e+00 : f32
    %20 = vector.broadcast %19 : f32 to vector<8x128xf32>
    %21 = vector.broadcast %cst_3 : f32 to vector<8x128xf32>
    %22 = arith.select %18, %20, %21 : vector<8x128xi1>, vector<8x128xf32>
    %23 = vector.extract_strided_slice %0 {offsets = [0, 3], sizes = [8, 1], strides = [1, 1]} : vector<8x8xi32> to vector<8x1xi32>
    %24 = vector.broadcast %23 : vector<8x1xi32> to vector<8x128xi32>
    %25 = arith.cmpi eq, %1, %24 : vector<8x128xi32>
    %c3 = arith.constant 3 : index
    %26 = memref.load %arg3[%c3] : memref<8xf32, #tpu.memory_space<smem>>
    %cst_4 = arith.constant 0.000000e+00 : f32
    %27 = vector.broadcast %26 : f32 to vector<8x128xf32>
    %28 = vector.broadcast %cst_4 : f32 to vector<8x128xf32>
    %29 = arith.select %25, %27, %28 : vector<8x128xi1>, vector<8x128xf32>
    %30 = vector.extract_strided_slice %0 {offsets = [0, 4], sizes = [8, 1], strides = [1, 1]} : vector<8x8xi32> to vector<8x1xi32>
    %31 = vector.broadcast %30 : vector<8x1xi32> to vector<8x128xi32>
    %32 = arith.cmpi eq, %1, %31 : vector<8x128xi32>
    %c4 = arith.constant 4 : index
    %33 = memref.load %arg3[%c4] : memref<8xf32, #tpu.memory_space<smem>>
    %cst_5 = arith.constant 0.000000e+00 : f32
    %34 = vector.broadcast %33 : f32 to vector<8x128xf32>
    %35 = vector.broadcast %cst_5 : f32 to vector<8x128xf32>
    %36 = arith.select %32, %34, %35 : vector<8x128xi1>, vector<8x128xf32>
    %37 = vector.extract_strided_slice %0 {offsets = [0, 5], sizes = [8, 1], strides = [1, 1]} : vector<8x8xi32> to vector<8x1xi32>
    %38 = vector.broadcast %37 : vector<8x1xi32> to vector<8x128xi32>
    %39 = arith.cmpi eq, %1, %38 : vector<8x128xi32>
    %c5 = arith.constant 5 : index
    %40 = memref.load %arg3[%c5] : memref<8xf32, #tpu.memory_space<smem>>
    %cst_6 = arith.constant 0.000000e+00 : f32
    %41 = vector.broadcast %40 : f32 to vector<8x128xf32>
    %42 = vector.broadcast %cst_6 : f32 to vector<8x128xf32>
    %43 = arith.select %39, %41, %42 : vector<8x128xi1>, vector<8x128xf32>
    %44 = vector.extract_strided_slice %0 {offsets = [0, 6], sizes = [8, 1], strides = [1, 1]} : vector<8x8xi32> to vector<8x1xi32>
    %45 = vector.broadcast %44 : vector<8x1xi32> to vector<8x128xi32>
    %46 = arith.cmpi eq, %1, %45 : vector<8x128xi32>
    %c6 = arith.constant 6 : index
    %47 = memref.load %arg3[%c6] : memref<8xf32, #tpu.memory_space<smem>>
    %cst_7 = arith.constant 0.000000e+00 : f32
    %48 = vector.broadcast %47 : f32 to vector<8x128xf32>
    %49 = vector.broadcast %cst_7 : f32 to vector<8x128xf32>
    %50 = arith.select %46, %48, %49 : vector<8x128xi1>, vector<8x128xf32>
    %51 = vector.extract_strided_slice %0 {offsets = [0, 7], sizes = [8, 1], strides = [1, 1]} : vector<8x8xi32> to vector<8x1xi32>
    %52 = vector.broadcast %51 : vector<8x1xi32> to vector<8x128xi32>
    %53 = arith.cmpi eq, %1, %52 : vector<8x128xi32>
    %c7 = arith.constant 7 : index
    %54 = memref.load %arg3[%c7] : memref<8xf32, #tpu.memory_space<smem>>
    %cst_8 = arith.constant 0.000000e+00 : f32
    %55 = vector.broadcast %54 : f32 to vector<8x128xf32>
    %56 = vector.broadcast %cst_8 : f32 to vector<8x128xf32>
    %57 = arith.select %53, %55, %56 : vector<8x128xi1>, vector<8x128xf32>
    %58 = arith.addf %8, %15 : vector<8x128xf32>
    %59 = arith.addf %22, %29 : vector<8x128xf32>
    %60 = arith.addf %36, %43 : vector<8x128xf32>
    %61 = arith.addf %50, %57 : vector<8x128xf32>
    %62 = arith.addf %58, %59 : vector<8x128xf32>
    %63 = arith.addf %60, %61 : vector<8x128xf32>
    %64 = arith.addf %62, %63 : vector<8x128xf32>
    %c0_9 = arith.constant 0 : index
    %c0_10 = arith.constant 0 : index
    %65 = vector.load %arg2[%c0_9, %c0_10] : memref<128x32xf32, #tpu.memory_space<vmem>>, vector<128x32xf32>
    %cst_11 = arith.constant dense<0.000000e+00> : vector<8x32xf32>
    %66 = tpu.matmul %64, %65, %cst_11 {dimension_numbers = #tpu.dot_dimension_numbers<[1], [0], [0], [1], [0, 0, 1, 1], [], []>} : vector<8x128xf32>, vector<128x32xf32>, vector<8x32xf32> -> vector<8x32xf32>
    %cst_12 = arith.constant dense<0.000000e+00> : vector<8xf32>
    %67 = vector.multi_reduction <add>, %66, %cst_12 [1] : vector<8x32xf32> to vector<8xf32>
    %68 = vector.shape_cast %67 : vector<8xf32> to vector<8x1xf32>
    %cst_13 = arith.constant 3.200000e+01 : f32
    %69 = vector.broadcast %cst_13 : f32 to vector<8x1xf32>
    %70 = arith.divf %68, %69 : vector<8x1xf32>
    %c0_14 = arith.constant 0 : index
    %71 = memref.load %arg4[%c0_14] : memref<1xf32, #tpu.memory_space<smem>>
    %72 = vector.broadcast %71 : f32 to vector<8x1xf32>
    %73 = arith.addf %70, %72 : vector<8x1xf32>
    %cst_15 = arith.constant 0.000000e+00 : f32
    %74 = vector.broadcast %cst_15 : f32 to vector<8x1xf32>
    %75 = arith.maximumf %73, %74 : vector<8x1xf32>
    %76 = tpu.iota {dimensions = array<i32: 1>} : vector<8x2xi32>
    %c0_i32 = arith.constant 0 : i32
    %77 = vector.broadcast %c0_i32 : i32 to vector<8x2xi32>
    %78 = arith.cmpi eq, %76, %77 : vector<8x2xi32>
    %c0_16 = arith.constant 0 : index
    %79 = memref.load %arg5[%c0_16] : memref<2xf32, #tpu.memory_space<smem>>
    %c1_17 = arith.constant 1 : index
    %80 = memref.load %arg5[%c1_17] : memref<2xf32, #tpu.memory_space<smem>>
    %81 = vector.broadcast %79 : f32 to vector<8x2xf32>
    %82 = vector.broadcast %80 : f32 to vector<8x2xf32>
    %83 = arith.select %78, %81, %82 : vector<8x2xi1>, vector<8x2xf32>
    %c0_i32_18 = arith.constant 0 : i32
    %84 = vector.broadcast %c0_i32_18 : i32 to vector<8x2xi32>
    %85 = arith.cmpi eq, %76, %84 : vector<8x2xi32>
    %c0_19 = arith.constant 0 : index
    %86 = memref.load %arg6[%c0_19] : memref<2xf32, #tpu.memory_space<smem>>
    %c1_20 = arith.constant 1 : index
    %87 = memref.load %arg6[%c1_20] : memref<2xf32, #tpu.memory_space<smem>>
    %88 = vector.broadcast %86 : f32 to vector<8x2xf32>
    %89 = vector.broadcast %87 : f32 to vector<8x2xf32>
    %90 = arith.select %85, %88, %89 : vector<8x2xi1>, vector<8x2xf32>
    %91 = vector.broadcast %75 : vector<8x1xf32> to vector<8x2xf32>
    %92 = arith.mulf %91, %83 : vector<8x2xf32>
    %93 = arith.addf %92, %90 : vector<8x2xf32>
    %c0_21 = arith.constant 0 : index
    %c0_22 = arith.constant 0 : index
    %94 = vector.load %arg7[%c0_21, %c0_22] : memref<8x2xf32, #tpu.memory_space<vmem>>, vector<8x2xf32>
    tpu.vector_store %arg7[%c0_21, %c0_22], %93 {strides = array<i32>} : memref<8x2xf32, #tpu.memory_space<vmem>>, vector<8x2xf32>,
    return
  }
  func.func @transform_0(%arg0: i32) -> (i32, i32) {
    %c0_i32 = arith.constant 0 : i32
    %c0_i32_0 = arith.constant 0 : i32
    return %arg0, %c0_i32 : i32, i32
  }
  func.func @transform_1(%arg0: i32) -> (i32, i32) {
    %c0_i32 = arith.constant 0 : i32
    %c0_i32_0 = arith.constant 0 : i32
    %c0_i32_1 = arith.constant 0 : i32
    return %c0_i32, %c0_i32_0 : i32, i32
  }
  func.func @transform_2(%arg0: i32) -> i32 {
    %c0_i32 = arith.constant 0 : i32
    %c0_i32_0 = arith.constant 0 : i32
    return %c0_i32 : i32
  }
  func.func @transform_3(%arg0: i32) -> i32 {
    %c0_i32 = arith.constant 0 : i32
    %c0_i32_0 = arith.constant 0 : i32
    return %c0_i32 : i32
  }
  func.func @transform_4(%arg0: i32) -> i32 {
    %c0_i32 = arith.constant 0 : i32
    %c0_i32_0 = arith.constant 0 : i32
    return %c0_i32 : i32
  }
  func.func @transform_5(%arg0: i32) -> i32 {
    %c0_i32 = arith.constant 0 : i32
    %c0_i32_0 = arith.constant 0 : i32
    return %c0_i32 : i32
  }
  func.func @transform_6(%arg0: i32) -> (i32, i32) {
    %c0_i32 = arith.constant 0 : i32
    %c0_i32_0 = arith.constant 0 : i32
    return %arg0, %c0_i32 : i32, i32
  }
}

</mosaic_0001>

<llo_original>
// kernel: tpu_custom_call.1
$region0: #{tpu_custom_call.1}
  #allocation0 [shape = 'u32[]', space=smem, size = 0x4, offset = 0x4, fixed_abs, tag = 'smem constant byte address 0x4 - core index']
  #allocation1 [shape = 'u32[144,128]{1,0:T(1,128)}', space=vmem, size = 0x12000, scoped, tag = 'internal scratch']
  #allocation2 [shape = 'f32[1]{0:T(128)S(6)}', space=smem, size = 0x200, scoped, tag = 'scoped memory for tpu_custom_call.1']
  %s0 = inlined_call_operand.vmem [shape: s32[16,8], index: 0, kind: input, shape index: {}]
  %s1 = inlined_call_operand.vmem [shape: f32[128,32], index: 1, kind: input, shape index: {}]
  %s2 = inlined_call_operand.vmem [shape: f32[8], index: 2, kind: input, shape index: {}]
  %s3 = inlined_call_operand.<no memory space> [shape: f32[1], index: 3, kind: input, shape index: {}]
  %s4 = inlined_call_operand.vmem [shape: f32[2], index: 4, kind: input, shape index: {}]
  %s5 = inlined_call_operand.vmem [shape: f32[2], index: 5, kind: input, shape index: {}]
  %s6 = inlined_call_operand.vmem [shape: f32[16,2], index: 6, kind: output, shape index: {}]
  %s7 = sld [smem:[#allocation0]]
  $region69: #{tpu_custom_call.1} parent=0
    _
  %s9 = ssub.s32 1, %s7
  %s10 = scalar_select 0, %s9, %s7
  %11 = sst [smem:[#allocation2]] %s3
  $region1: #{tpu_custom_call.1} parent=0
    #allocation3 [shape = 'u8[512]{0}', space=smem, size = 0x200, scoped, tag = 'input window, operand 2, single buffered']
    #allocation4 [shape = 's32[2]{0}', space=sflag, size = 0x8, scoped, tag = 'scoped memory for tpu_custom_call.1']
    #allocation5 [shape = 'u8[512]{0}', space=smem, size = 0x200, scoped, tag = 'input window, operand 4, single buffered']
    #allocation6 [shape = 's32[1]{0}', space=sflag, size = 0x4, scoped, tag = 'scoped memory for tpu_custom_call.1']
    #allocation7 [shape = 'u8[512]{0}', space=smem, size = 0x200, scoped, tag = 'input window, operand 5, single buffered']
    %12 = vsyncpa [#allocation4], 0
    %13 = vsyncpa [#allocation6], 0
    loop: start=0, step=1, limit=4
    $region2: #{tpu_custom_call.1} parent=1 // loop_pre_header
      _
    $region3: #{tpu_custom_call.1} parent=1 // loop_header
      %s15 = sphi 0, %s19
      %p16 = scmp.ge.s32.totalorder %s15, 4
      %s25 = sphi 0, %s27
      %s28 = sphi 0, %s25
      %s29 = sphi 0, %s28
      %s45 = sphi 0, %s29
      %s49 = sphi 0, %s49
      %s51 = sphi 0, %s49
      %s52 = sphi 0, %s51
      %s66 = sphi 0, %s52
      %s70 = sphi 0, %s70
      %s72 = sphi 0, %s70
      %s73 = sphi 0, %s72
      %s87 = sphi 0, %s73
      %s91 = sphi 0, %s91
      %s93 = sphi 0, %s91
      %s94 = sphi 0, %s93
      %s108 = sphi 0, %s94
      %s112 = sphi 0, %s112
      %s114 = sphi 0, %s112
      %s115 = sphi 0, %s114
      %s129 = sphi 0, %s115
      %s133 = sphi 0, %s133
      %s135 = sphi 0, %s133
      %s136 = sphi 0, %s135
      %s150 = sphi 0, %s136
      %s156 = sphi 0, %s158
      %s159 = sphi 0, %s156
      %s160 = sphi 0, %s159
      %s176 = sphi 0, %s160
    $region4: #{tpu_custom_call.1} parent=1 // loop_header_branch
      %18 = sbr.rel (%p16) target = $region8
    $region5: #{tpu_custom_call.1} parent=1 // loop_body
      %s20 = ssub.s32 %s15, 1
      %s21 = ssub.s32 %s15, 2
      %s22 = sadd.s32 %s15, 1
      %s23 = ssub.s32 %s15, %s22
      %p24 = scmp.eq.s32.totalorder %s23, 0
      %s26 = sadd.s32 %s25, 1
      %s27 = scalar_select %p24, %s25, %s26
      %p30 = pneg %p24
      %p31 = scmp.eq.s32.totalorder %s15, 1
      %p32 = por %p30, %p31
      %p33 = scmp.ne.s32.totalorder %s25, %s28
      %p34 = scmp.eq.s32.totalorder %s15, 0
      %p35 = por %p33, %p34
      %p36 = scmp.ne.s32.totalorder %s25, %s28
      %p37 = scmp.eq.s32.totalorder %s20, 1
      %p38 = por %p36, %p37
      %p39 = scmp.ne.s32.totalorder %s28, %s29
      %p40 = scmp.eq.s32.totalorder %s20, 0
      %p41 = por %p39, %p40
      %p42 = scmp.ne.s32.totalorder %s28, %s29
      %p43 = scmp.eq.s32.totalorder %s21, 1
      %p44 = por %p42, %p43
      %p46 = scmp.ne.s32.totalorder %s29, %s45
      %p47 = scmp.eq.s32.totalorder %s21, 0
      %p48 = por %p46, %p47
      %s50 = sadd.s32 %s49, 1
      %p53 = scmp.eq.s32.totalorder %s15, 1
      %p54 = scmp.ne.s32.totalorder %s49, %s51
      %p55 = scmp.eq.s32.totalorder %s15, 0
      %p56 = por %p54, %p55
      %p57 = scmp.ne.s32.totalorder %s49, %s51
      %p58 = scmp.eq.s32.totalorder %s20, 1
      %p59 = por %p57, %p58
      %p60 = scmp.ne.s32.totalorder %s51, %s52
      %p61 = scmp.eq.s32.totalorder %s20, 0
      %p62 = por %p60, %p61
      %p63 = scmp.ne.s32.totalorder %s51, %s52
      %p64 = scmp.eq.s32.totalorder %s21, 1
      %p65 = por %p63, %p64
      %p67 = scmp.ne.s32.totalorder %s52, %s66
      %p68 = scmp.eq.s32.totalorder %s21, 0
      %p69 = por %p67, %p68
      %s71 = sadd.s32 %s70, 1
      %p74 = scmp.eq.s32.totalorder %s15, 1
      %p75 = scmp.ne.s32.totalorder %s70, %s72
      %p76 = scmp.eq.s32.totalorder %s15, 0
      %p77 = por %p75, %p76
      %p78 = scmp.ne.s32.totalorder %s70, %s72
      %p79 = scmp.eq.s32.totalorder %s20, 1
      %p80 = por %p78, %p79
      %p81 = scmp.ne.s32.totalorder %s72, %s73
      %p82 = scmp.eq.s32.totalorder %s20, 0
      %p83 = por %p81, %p82
      %p84 = scmp.ne.s32.totalorder %s72, %s73
      %p85 = scmp.eq.s32.totalorder %s21, 1
      %p86 = por %p84, %p85
      %p88 = scmp.ne.s32.totalorder %s73, %s87
      %p89 = scmp.eq.s32.totalorder %s21, 0
      %p90 = por %p88, %p89
      %s92 = sadd.s32 %s91, 1
      %p95 = scmp.eq.s32.totalorder %s15, 1
      %p96 = scmp.ne.s32.totalorder %s91, %s93
      %p97 = scmp.eq.s32.totalorder %s15, 0
      %p98 = por %p96, %p97
      %p99 = scmp.ne.s32.totalorder %s91, %s93
      %p100 = scmp.eq.s32.totalorder %s20, 1
      %p101 = por %p99, %p100
      %p102 = scmp.ne.s32.totalorder %s93, %s94
      %p103 = scmp.eq.s32.totalorder %s20, 0
      %p104 = por %p102, %p103
      %p105 = scmp.ne.s32.totalorder %s93, %s94
      %p106 = scmp.eq.s32.totalorder %s21, 1
      %p107 = por %p105, %p106
      %p109 = scmp.ne.s32.totalorder %s94, %s108
      %p110 = scmp.eq.s32.totalorder %s21, 0
      %p111 = por %p109, %p110
      %s113 = sadd.s32 %s112, 1
      %p116 = scmp.eq.s32.totalorder %s15, 1
      %p117 = scmp.ne.s32.totalorder %s112, %s114
      %p118 = scmp.eq.s32.totalorder %s15, 0
      %p119 = por %p117, %p118
      %p120 = scmp.ne.s32.totalorder %s112, %s114
      %p121 = scmp.eq.s32.totalorder %s20, 1
      %p122 = por %p120, %p121
      %p123 = scmp.ne.s32.totalorder %s114, %s115
      %p124 = scmp.eq.s32.totalorder %s20, 0
      %p125 = por %p123, %p124
      %p126 = scmp.ne.s32.totalorder %s114, %s115
      %p127 = scmp.eq.s32.totalorder %s21, 1
      %p128 = por %p126, %p127
      %p130 = scmp.ne.s32.totalorder %s115, %s129
      %p131 = scmp.eq.s32.totalorder %s21, 0
      %p132 = por %p130, %p131
      %s134 = sadd.s32 %s133, 1
      %p137 = scmp.eq.s32.totalorder %s15, 1
      %p138 = scmp.ne.s32.totalorder %s133, %s135
      %p139 = scmp.eq.s32.totalorder %s15, 0
      %p140 = por %p138, %p139
      %p141 = scmp.ne.s32.totalorder %s133, %s135
      %p142 = scmp.eq.s32.totalorder %s20, 1
      %p143 = por %p141, %p142
      %p144 = scmp.ne.s32.totalorder %s135, %s136
      %p145 = scmp.eq.s32.totalorder %s20, 0
      %p146 = por %p144, %p145
      %p147 = scmp.ne.s32.totalorder %s135, %s136
      %p148 = scmp.eq.s32.totalorder %s21, 1
      %p149 = por %p147, %p148
      %p151 = scmp.ne.s32.totalorder %s136, %s150
      %p152 = scmp.eq.s32.totalorder %s21, 0
      %p153 = por %p151, %p152
      %s154 = ssub.s32 %s15, %s22
      %p155 = scmp.eq.s32.totalorder %s154, 0
      %s157 = sadd.s32 %s156, 1
      %s158 = scalar_select %p155, %s156, %s157
      %p161 = pneg %p155
      %p162 = scmp.eq.s32.totalorder %s15, 1
      %p163 = por %p161, %p162
      %p164 = scmp.ne.s32.totalorder %s156, %s159
      %p165 = scmp.eq.s32.totalorder %s15, 0
      %p166 = por %p164, %p165
      %p167 = scmp.ne.s32.totalorder %s156, %s159
      %p168 = scmp.eq.s32.totalorder %s20, 1
      %p169 = por %p167, %p168
      %p170 = scmp.ne.s32.totalorder %s159, %s160
      %p171 = scmp.eq.s32.totalorder %s20, 0
      %p172 = por %p170, %p171
      %p173 = scmp.ne.s32.totalorder %s159, %s160
      %p174 = scmp.eq.s32.totalorder %s21, 1
      %p175 = por %p173, %p174
      %p177 = scmp.ne.s32.totalorder %s160, %s176
      %p178 = scmp.eq.s32.totalorder %s21, 0
      %p179 = por %p177, %p178
      %p180 = scmp.le.s32.totalorder 1, %s15
      %p181 = scmp.lt.s32.totalorder %s15, 3
      %p182 = pnand %p180, %p181
      %p183 = pneg %p182
      // Predicated region
      $region9: #{tpu_custom_call.1} parent=5 // pred_check
        _
      $region10: #{tpu_custom_call.1} parent=5 // pred_check_branch
        %185 = sbr.rel (%p182) target = $region12
      $region11: #{tpu_custom_call.1} parent=5 // pred_region
        %s186 = ssub.s32 %s15, 1
        // Predicated region
        $region13: #{tpu_custom_call.1} parent=11 // pred_check
          %p187 = pneg %p62
        $region14: #{tpu_custom_call.1} parent=11 // pred_check_branch
          %189 = sbr.rel (%p187) target = $region16
        $region15: #{tpu_custom_call.1} parent=11 // pred_region
          _
        $region16: #{tpu_custom_call.1} parent=11 // pred_fallthru
          _
        // Predicated region
        $region17: #{tpu_custom_call.1} parent=11 // pred_check
          %p190 = pneg %p83
        $region18: #{tpu_custom_call.1} parent=11 // pred_check_branch
          %192 = sbr.rel (%p190) target = $region20
        $region19: #{tpu_custom_call.1} parent=11 // pred_region
          %s194 = ssub.s32 16, 16
          %195 = vsyncadd [#allocation4], %s194
          %s197 = sshll.u32 %s2, 4
          %s198 = int_to_ptr.vmem [resolvable:$true] %s197
          %200 = dma.vmem_to_smem %s198, 16, [#allocation3], [#allocation4]
        $region20: #{tpu_custom_call.1} parent=11 // pred_fallthru
          _
        // Predicated region
        $region21: #{tpu_custom_call.1} parent=11 // pred_check
          %p201 = pneg %p104
        $region22: #{tpu_custom_call.1} parent=11 // pred_check_branch
          %203 = sbr.rel (%p201) target = $region24
        $region23: #{tpu_custom_call.1} parent=11 // pred_region
          _
        $region24: #{tpu_custom_call.1} parent=11 // pred_fallthru
          _
        // Predicated region
        $region25: #{tpu_custom_call.1} parent=11 // pred_check
          %p204 = pneg %p125
        $region26: #{tpu_custom_call.1} parent=11 // pred_check_branch
          %206 = sbr.rel (%p204) target = $region28
        $region27: #{tpu_custom_call.1} parent=11 // pred_region
          %s208 = ssub.s32 16, 16
          %209 = vsyncadd [#allocation6], %s208
          %s211 = sshll.u32 %s4, 4
          %s212 = int_to_ptr.vmem [resolvable:$true] %s211
          %214 = dma.vmem_to_smem %s212, 16, [#allocation5], [#allocation6]
        $region28: #{tpu_custom_call.1} parent=11 // pred_fallthru
          _
        // Predicated region
        $region29: #{tpu_custom_call.1} parent=11 // pred_check
          %p215 = pneg %p146
        $region30: #{tpu_custom_call.1} parent=11 // pred_check_branch
          %217 = sbr.rel (%p215) target = $region32
        $region31: #{tpu_custom_call.1} parent=11 // pred_region
          %s219 = ssub.s32 16, 16
          %220 = vsyncadd [#allocation6], %s219
          %s222 = sshll.u32 %s5, 4
          %s223 = int_to_ptr.vmem [resolvable:$true] %s222
          %225 = dma.vmem_to_smem %s223, 16, [#allocation7], [#allocation6]
        $region32: #{tpu_custom_call.1} parent=11 // pred_fallthru
          _
      $region12: #{tpu_custom_call.1} parent=5 // pred_fallthru
        _
      %p226 = scmp.lt.s32.totalorder %s15, 2
      // Predicated region
      $region33: #{tpu_custom_call.1} parent=5 // pred_check
        %p227 = pneg %p226
      $region34: #{tpu_custom_call.1} parent=5 // pred_check_branch
        %229 = sbr.rel (%p227) target = $region36
      $region35: #{tpu_custom_call.1} parent=5 // pred_region
        // Predicated region
        $region37: #{tpu_custom_call.1} parent=35 // pred_check
          %p230 = pneg %p35
        $region38: #{tpu_custom_call.1} parent=35 // pred_check_branch
          %232 = sbr.rel (%p230) target = $region40
        $region39: #{tpu_custom_call.1} parent=35 // pred_region
          %p233 = scmp.lt.s32.totalorder %s15, 1
          %s234 = scalar_select %p233, %s15, 1
          %s235 = smul.addr %s234, 8
          %s236 = scalar_lea.vmem %s0, %s235
        $region40: #{tpu_custom_call.1} parent=35 // pred_fallthru
          _
      $region36: #{tpu_custom_call.1} parent=5 // pred_fallthru
        _
      %p237 = scmp.le.s32.totalorder 1, %s15
      %p238 = scmp.lt.s32.totalorder %s15, 3
      %p239 = pnand %p237, %p238
      %p240 = pneg %p239
      // Predicated region
      $region41: #{tpu_custom_call.1} parent=5 // pred_check
        _
      $region42: #{tpu_custom_call.1} parent=5 // pred_check_branch
        %242 = sbr.rel (%p239) target = $region44
      $region43: #{tpu_custom_call.1} parent=5 // pred_region
        %s243 = ssub.s32 %s15, 1
        // Predicated region
        $region45: #{tpu_custom_call.1} parent=43 // pred_check
          %p244 = pneg %p83
        $region46: #{tpu_custom_call.1} parent=43 // pred_check_branch
          %246 = sbr.rel (%p244) target = $region48
        $region47: #{tpu_custom_call.1} parent=43 // pred_region
          %247 = dma.done [#allocation4], 16
        $region48: #{tpu_custom_call.1} parent=43 // pred_fallthru
          _
        // Predicated region
        $region49: #{tpu_custom_call.1} parent=43 // pred_check
          %p248 = pneg %p125
        $region50: #{tpu_custom_call.1} parent=43 // pred_check_branch
          %250 = sbr.rel (%p248) target = $region52
        $region51: #{tpu_custom_call.1} parent=43 // pred_region
          %251 = dma.done [#allocation6], 16
        $region52: #{tpu_custom_call.1} parent=43 // pred_fallthru
          _
        // Predicated region
        $region53: #{tpu_custom_call.1} parent=43 // pred_check
          %p252 = pneg %p146
        $region54: #{tpu_custom_call.1} parent=43 // pred_check_branch
          %254 = sbr.rel (%p252) target = $region56
        $region55: #{tpu_custom_call.1} parent=43 // pred_region
          %255 = dma.done [#allocation6], 16
        $region56: #{tpu_custom_call.1} parent=43 // pred_fallthru
          _
        %256 = sfence
        %p257 = scmp.lt.s32.totalorder %s20, 1
        %s258 = scalar_select %p257, %s20, 1
        %s259 = smul.addr %s258, 8
        %s260 = scalar_lea.vmem %s0, %s259
        %p261 = pneg %p41
        %p262 = pneg %p38
        %p263 = pneg %p62
        %p264 = pneg %p59
        %p265 = pneg %p83
        %p266 = pneg %p80
        %p267 = pneg %p104
        %p268 = pneg %p101
        %p269 = pneg %p125
        %p270 = pneg %p122
        %p271 = pneg %p146
        %p272 = pneg %p143
        %p273 = pneg %p172
        %p274 = pneg %p169
        %p275 = scmp.lt.s32.totalorder %s20, 1
        %s276 = scalar_select %p275, %s20, 1
        %s277 = smul.addr %s276, 8
        %s278 = scalar_lea.vmem %s6, %s277
        %p279 = scmp.lt.s32.totalorder %s20, 1
        %s280 = scalar_select %p279, %s20, 1
        %s281 = smul.addr %s280, 8
        %s282 = scalar_lea.vmem %s0, %s281
        %p283 = scmp.lt.s32.totalorder %s20, 1
        %s284 = scalar_select %p283, %s20, 1
        %s285 = smul.addr %s284, 8
        %s286 = scalar_lea.vmem %s6, %s285
        %v287 = vld [vmem:[%s282] sm:$0xff]
        %v288 = vlaneseq
        %v289 = vand.u32 %v288, 127
        %290 = vset.pattern.permute.xlu0 0
        %291 = vperm.xlu0 %290, %v287
        %v292 = vpop.permute.xlu0 %291
        %vm293 = vcmp.eq.s32.totalorder %v289, %v292
        %s294 = sld [smem:[#allocation3]]
        %v295 = vstv %s294
        %v296 = vsel %vm293, %v295, 0.0
        %297 = vset.pattern.permute.xlu0 1
        %298 = vperm.xlu0 %297, %v287
        %v299 = vpop.permute.xlu0 %298
        %vm300 = vcmp.eq.s32.totalorder %v289, %v299
        %s301 = sld [smem:[#allocation3 + $0x1]]
        %v302 = vstv %s301
        %v303 = vsel %vm300, %v302, 0.0
        %304 = vset.pattern.permute.xlu0 2
        %305 = vperm.xlu0 %304, %v287
        %v306 = vpop.permute.xlu0 %305
        %vm307 = vcmp.eq.s32.totalorder %v289, %v306
        %s308 = sld [smem:[#allocation3 + $0x2]]
        %v309 = vstv %s308
        %v310 = vsel %vm307, %v309, 0.0
        %311 = vset.pattern.permute.xlu0 3
        %312 = vperm.xlu0 %311, %v287
        %v313 = vpop.permute.xlu0 %312
        %vm314 = vcmp.eq.s32.totalorder %v289, %v313
        %s315 = sld [smem:[#allocation3 + $0x3]]
        %v316 = vstv %s315
        %v317 = vsel %vm314, %v316, 0.0
        %318 = vset.pattern.permute.xlu0 4
        %319 = vperm.xlu0 %318, %v287
        %v320 = vpop.permute.xlu0 %319
        %vm321 = vcmp.eq.s32.totalorder %v289, %v320
        %s322 = sld [smem:[#allocation3 + $0x4]]
        %v323 = vstv %s322
        %v324 = vsel %vm321, %v323, 0.0
        %325 = vset.pattern.permute.xlu0 5
        %326 = vperm.xlu0 %325, %v287
        %v327 = vpop.permute.xlu0 %326
        %vm328 = vcmp.eq.s32.totalorder %v289, %v327
        %s329 = sld [smem:[#allocation3 + $0x5]]
        %v330 = vstv %s329
        %v331 = vsel %vm328, %v330, 0.0
        %332 = vset.pattern.permute.xlu0 6
        %333 = vperm.xlu0 %332, %v287
        %v334 = vpop.permute.xlu0 %333
        %vm335 = vcmp.eq.s32.totalorder %v289, %v334
        %s336 = sld [smem:[#allocation3 + $0x6]]
        %v337 = vstv %s336
        %v338 = vsel %vm335, %v337, 0.0
        %339 = vset.pattern.permute.xlu0 7
        %340 = vperm.xlu0 %339, %v287
        %v341 = vpop.permute.xlu0 %340
        %vm342 = vcmp.eq.s32.totalorder %v289, %v341
        %s343 = sld [smem:[#allocation3 + $0x7]]
        %v344 = vstv %s343
        %v345 = vsel %vm342, %v344, 0.0
        %v346 = vadd.f32 %v296, %v303
        %v347 = vadd.f32 %v310, %v317
        %v348 = vadd.f32 %v324, %v331
        %v349 = vadd.f32 %v338, %v345
        %v350 = vadd.f32 %v346, %v347
        %v351 = vadd.f32 %v348, %v349
        %v352 = vadd.f32 %v350, %v351
        %v353 = vld [vmem:[%s1] sm:$0xff]
        %v354 = vld [vmem:[%s1 + $0x8] sm:$0xff]
        %v355 = vld [vmem:[%s1 + $0x10] sm:$0xff]
        %v356 = vld [vmem:[%s1 + $0x18] sm:$0xff]
        %v357 = vld [vmem:[%s1 + $0x20] sm:$0xff]
        %v358 = vld [vmem:[%s1 + $0x28] sm:$0xff]
        %v359 = vld [vmem:[%s1 + $0x30] sm:$0xff]
        %v360 = vld [vmem:[%s1 + $0x38] sm:$0xff]
        %v361 = vld [vmem:[%s1 + $0x40] sm:$0xff]
        %v362 = vld [vmem:[%s1 + $0x48] sm:$0xff]
        %v363 = vld [vmem:[%s1 + $0x50] sm:$0xff]
        %v364 = vld [vmem:[%s1 + $0x58] sm:$0xff]
        %v365 = vld [vmem:[%s1 + $0x60] sm:$0xff]
        %v366 = vld [vmem:[%s1 + $0x68] sm:$0xff]
        %v367 = vld [vmem:[%s1 + $0x70] sm:$0xff]
        %v368 = vld [vmem:[%s1 + $0x78] sm:$0xff]
        %369 = vmatprep.subr.mxu0 0.0
        %370 = vmatpush1.msra.mxu0 %v353
        %371 = vmatprep.subr.mxu0 0.0
        %372 = vmatpush1.msra.mxu0 %v354
        %373 = vmatprep.subr.mxu0 0.0
        %374 = vmatpush1.msra.mxu0 %v355
        %375 = vmatprep.subr.mxu0 0.0
        %376 = vmatpush1.msra.mxu0 %v356
        %377 = vmatprep.subr.mxu0 0.0
        %378 = vmatpush1.msra.mxu0 %v357
        %379 = vmatprep.subr.mxu0 0.0
        %380 = vmatpush1.msra.mxu0 %v358
        %381 = vmatprep.subr.mxu0 0.0
        %382 = vmatpush1.msra.mxu0 %v359
        %383 = vmatprep.subr.mxu0 0.0
        %384 = vmatpush1.msra.mxu0 %v360
        %385 = vmatprep.subr.mxu0 0.0
        %386 = vmatpush1.msra.mxu0 %v361
        %387 = vmatprep.subr.mxu0 0.0
        %388 = vmatpush1.msra.mxu0 %v362
        %389 = vmatprep.subr.mxu0 0.0
        %390 = vmatpush1.msra.mxu0 %v363
        %391 = vmatprep.subr.mxu0 0.0
        %392 = vmatpush1.msra.mxu0 %v364
        %393 = vmatprep.subr.mxu0 0.0
        %394 = vmatpush1.msra.mxu0 %v365
        %395 = vmatprep.subr.mxu0 0.0
        %396 = vmatpush1.msra.mxu0 %v366
        %397 = vmatprep.subr.mxu0 0.0
        %398 = vmatpush1.msra.mxu0 %v367
        %399 = vmatprep.subr.mxu0 0.0
        %400 = vmatpush1.msra.mxu0 %v368
        %401 = vmatprep.subr.mxu0 0.0
        %402 = vmatpush1.msra.mxu0 0.0
        %403 = vmatprep.subr.mxu0 0.0
        %404 = vmatpush1.msra.mxu0 0.0
        %405 = vmatprep.subr.mxu0 0.0
        %406 = vmatpush1.msra.mxu0 0.0
        %407 = vmatprep.subr.mxu0 0.0
        %408 = vmatpush1.msra.mxu0 0.0
        %409 = vmatprep.subr.mxu0 0.0
        %410 = vmatpush1.msra.mxu0 0.0
        %411 = vmatprep.subr.mxu0 0.0
        %412 = vmatpush1.msra.mxu0 0.0
        %413 = vmatprep.subr.mxu0 0.0
        %414 = vmatpush1.msra.mxu0 0.0
        %415 = vmatprep.subr.mxu0 0.0
        %416 = vmatpush1.msra.mxu0 0.0
        %417 = vmatprep.subr.mxu0 0.0
        %418 = vmatpush1.msra.mxu0 0.0
        %419 = vmatprep.subr.mxu0 0.0
        %420 = vmatpush1.msra.mxu0 0.0
        %421 = vmatprep.subr.mxu0 0.0
        %422 = vmatpush1.msra.mxu0 0.0
        %423 = vmatprep.subr.mxu0 0.0
        %424 = vmatpush1.msra.mxu0 0.0
        %425 = vmatprep.subr.mxu0 0.0
        %426 = vmatpush1.msra.mxu0 0.0
        %427 = vmatprep.subr.mxu0 0.0
        %428 = vmatpush1.msra.mxu0 0.0
        %429 = vmatprep.subr.mxu0 0.0
        %430 = vmatpush1.msra.mxu0 0.0
        %431 = vmatprep.subr.mxu0 0.0
        %432 = vmatpush1.msra.mxu0 0.0
        %433 = vmatprep.mubr.f32.mxu0 0.0
        %434 = vmatmul.mubr.f32.gmra.mrb[0].mxu0 %v352
        %v435 = vpop.f32.mrb[0].mxu0
        %v436 = vadd.f32 0.0, %v435
        %v437 = vpop.f32.mrb[0].mxu0
        %438 = vdwg.mxu0
        %vm439 = vcmask 261120
        %v440 = vsel %vm439, %v436, 0.0
        %441 = vadd.xlane.f32.xlu0 %v440
        %v442 = vpop.xlane.xlu0 %441
        %v443 = vrcp.pop 32.0
        %v444 = vmul.f32 %v442, %v443
        %s445 = sld [smem:[#allocation2]]
        %v446 = vstv %s445
        %v447 = vadd.f32 %v444, %v446
        %v448 = vmax.f32 %v447, 0.0
        %vm449 = vcmp.eq.s32.totalorder %v289, 0
        %s450 = sld [smem:[#allocation5]]
        %s451 = sld [smem:[#allocation5 + $0x1]]
        %v452 = vstv %s450
        %v453 = vstv %s451
        %v454 = vsel %vm449, %v452, %v453
        %s455 = sld [smem:[#allocation7]]
        %s456 = sld [smem:[#allocation7 + $0x1]]
        %v457 = vstv %s455
        %v458 = vstv %s456
        %v459 = vsel %vm449, %v457, %v458
        %v460 = vmul.f32 %v448, %v454
        %v461 = vadd.f32 %v460, %v459
        %vm462 = vcmask 15360
        %463 = vst.msk [vmem:[%s286] sm:$0xff] %vm462, %v461
        %p464 = scmp.lt.s32.totalorder %s20, 1
        %s465 = scalar_select %p464, %s20, 1
        %s466 = smul.addr %s465, 8
        %s467 = scalar_lea.vmem %s6, %s466
        // Predicated region
        $region57: #{tpu_custom_call.1} parent=43 // pred_check
          %p468 = pneg %p169
        $region58: #{tpu_custom_call.1} parent=43 // pred_check_branch
          %470 = sbr.rel (%p468) target = $region60
        $region59: #{tpu_custom_call.1} parent=43 // pred_region
          _
        $region60: #{tpu_custom_call.1} parent=43 // pred_fallthru
          _
      $region44: #{tpu_custom_call.1} parent=5 // pred_fallthru
        _
      %p471 = scmp.le.s32.totalorder 2, %s15
      // Predicated region
      $region61: #{tpu_custom_call.1} parent=5 // pred_check
        %p472 = pneg %p471
      $region62: #{tpu_custom_call.1} parent=5 // pred_check_branch
        %474 = sbr.rel (%p472) target = $region64
      $region63: #{tpu_custom_call.1} parent=5 // pred_region
        %s475 = ssub.s32 %s15, 2
        // Predicated region
        $region65: #{tpu_custom_call.1} parent=63 // pred_check
          %p476 = pneg %p175
        $region66: #{tpu_custom_call.1} parent=63 // pred_check_branch
          %478 = sbr.rel (%p476) target = $region68
        $region67: #{tpu_custom_call.1} parent=63 // pred_region
          %p479 = scmp.lt.s32.totalorder %s21, 1
          %s480 = scalar_select %p479, %s21, 1
          %s481 = smul.addr %s480, 8
          %s482 = scalar_lea.vmem %s6, %s481
        $region68: #{tpu_custom_call.1} parent=63 // pred_fallthru
          _
      $region64: #{tpu_custom_call.1} parent=5 // pred_fallthru
        _
    $region6: #{tpu_custom_call.1} parent=1 // loop_footer
      %s19 = sadd.s32 1, %s15
    $region7: #{tpu_custom_call.1} parent=1 // loop_footer_branch
      %14 = sbr.rel target = $region3
    $region8: #{tpu_custom_call.1} parent=1 // loop_exit
      _
    %483 = vsyncpa [#allocation4], 1
    %s484 = scalar_lea.sflag [#allocation4], 1
    %485 = vsyncpa %s484, 1
    %486 = vsyncpa [#allocation6], 1

</llo_original>
